<compile_context>
chip_gen: v5e
topology: v5e:2x2
jax: 0.10.0
libtpu: 0.0.40
codegen_flags: <defaults>
</compile_context>

<pallas_src>
import jax
import jax.numpy as jnp
from jax.experimental import pallas as pl
from jax.experimental.pallas import tpu as pltpu


_TARGET_BLOCK_BYTES = 2 * 1024 * 1024   # ~2 MiB x-block; fits all generations
_VMEM_LIMIT_BYTES = 32 * 1024 * 1024    # safe on v5e/v6e/v7x
_MAX_LANE_TILE = 2048                   # default lane tile cap
_MAX_UNROLLED_LANES = 8192              # hard cap on unrolled 128-lane chunks


def _tile_size(n, unit, cap):
    """Largest multiple of `unit` dividing n and <= cap (n % unit == 0)."""
    best = unit
    m = n // unit
    max_q = max(1, cap // unit)
    for q in range(1, m + 1):
        if m % q == 0 and q <= max_q:
            best = q * unit
    return best


def _pick_block(r_pad, l_pad, itemsize):
    """Pick (r_blk, l_tile) aiming for ~_TARGET_BLOCK_BYTES per x block."""
    l_tile = _tile_size(l_pad, 128, _MAX_LANE_TILE)
    r_blk = _tile_size(r_pad, 8,
                       max(8, _TARGET_BLOCK_BYTES // (l_tile * itemsize)))
    # If rows are exhausted and the block is still small, regrow the lane tile
    # (bounded so the static chunk loops stay reasonably unrolled).
    if r_blk == r_pad and r_blk * l_tile * itemsize < _TARGET_BLOCK_BYTES:
        cap = min(_MAX_UNROLLED_LANES,
                  max(l_tile, _TARGET_BLOCK_BYTES // (r_blk * itemsize)))
        l_tile = _tile_size(l_pad, 128, cap)
    return r_blk, l_tile


def _bn_stats_kernel(x_ref, sum_ref, sumsq_ref):
    # x_ref: (r_blk, l_tile) in input dtype.
    # sum_ref / sumsq_ref: (r_blk, 128) f32 lane-dense per-row-block partials.
    @pl.when(pl.program_id(1) == 0)
    def _():
        sum_ref[...] = jnp.zeros_like(sum_ref)
        sumsq_ref[...] = jnp.zeros_like(sumsq_ref)

    l_tile = x_ref.shape[-1]
    s = sum_ref[...]
    ss = sumsq_ref[...]
    # Pure VPU adds over lane-aligned 128-wide chunks (no XLU reduction).
    for k in range(l_tile // 128):
        xk = x_ref[:, k * 128:(k + 1) * 128].astype(jnp.float32)
        s = s + xk
        ss = ss + xk * xk
    sum_ref[...] = s
    sumsq_ref[...] = ss


def _bn_norm_kernel(x_ref, scale_ref, bias_ref, y_ref):
    # x_ref/y_ref: (r_blk, l_tile); scale/bias: (r_blk, 128) f32, resident.
    s = scale_ref[...]
    b = bias_ref[...]
    l_tile = x_ref.shape[-1]
    for k in range(l_tile // 128):
        sl = slice(k * 128, (k + 1) * 128)
        xk = x_ref[:, sl].astype(jnp.float32)
        y_ref[:, sl] = (xk * s + b).astype(y_ref.dtype)


def _pad_rows_lanes(arr2d, r_pad, l_pad):
    r, l = arr2d.shape
    if r_pad == r and l_pad == l:
        return arr2d
    return jnp.pad(arr2d, ((0, r_pad - r), (0, l_pad - l)))


def my_batchnorm2d(x_nchw, gamma, beta, running_mean, running_var,
                   eps=1e-5, momentum=0.1, training=True):
    """BatchNorm2d forward matching MyBatchNorm2d semantics.

    Returns (y_nchw, new_running_mean, new_running_var).  y keeps x's dtype.
    """
    N, C, H, W = x_nchw.shape
    L = H * W
    R = N * C
    x = x_nchw.reshape(R, L)                     # free row-major view
    itemsize = jnp.dtype(x.dtype).itemsize

    r_pad = -(-R // 8) * 8
    l_pad = -(-L // 128) * 128
    x_p = _pad_rows_lanes(x, r_pad, l_pad)       # no-op copy-free when aligned

    r_blk, l_tile = _pick_block(r_pad, l_pad, itemsize)
    n_r = r_pad // r_blk
    n_l = l_pad // l_tile

    gamma_f = gamma.astype(jnp.float32)
    beta_f = beta.astype(jnp.float32)

    if training:
        sums, sumsqs = pl.pallas_call(
            _bn_stats_kernel,
            out_shape=(jax.ShapeDtypeStruct((r_pad, 128), jnp.float32),
                       jax.ShapeDtypeStruct((r_pad, 128), jnp.float32)),
            grid=(n_r, n_l),
            in_specs=[pl.BlockSpec((r_blk, l_tile), lambda r, l: (r, l))],
            out_specs=(pl.BlockSpec((r_blk, 128), lambda r, l: (r, 0)),
                       pl.BlockSpec((r_blk, 128), lambda r, l: (r, 0))),
            compiler_params=pltpu.CompilerParams(
                dimension_semantics=("parallel", "arbitrary"),
                vmem_limit_bytes=_VMEM_LIMIT_BYTES),
        )(x_p)

        # Tiny host glue: fold the 128 lanes and the batch dimension.
        count = float(N * L)
        sum_c = sums[:R].reshape(N, C, 128).sum(axis=(0, 2))
        sumsq_c = sumsqs[:R].reshape(N, C, 128).sum(axis=(0, 2))
        batch_mean = sum_c / count
        batch_var = jnp.maximum(sumsq_c / count - batch_mean * batch_mean, 0.0)

        mean = batch_mean
        var = batch_var
        new_running_mean = ((1.0 - momentum) * running_mean.astype(jnp.float32)
                            + momentum * batch_mean).astype(running_mean.dtype)
        new_running_var = ((1.0 - momentum) * running_var.astype(jnp.float32)
                           + momentum * batch_var).astype(running_var.dtype)
    else:
        mean = running_mean.astype(jnp.float32)
        var = running_var.astype(jnp.float32)
        new_running_mean = running_mean
        new_running_var = running_var

    # Fold per-channel params into per-row scale/bias: y = x * scale + bias.
    inv_std = jax.lax.rsqrt(var + eps)
    scale_c = gamma_f * inv_std                          # (C,)
    bias_c = beta_f - mean * scale_c                     # (C,)

    def _per_row_lane_dense(vec_c):
        rows = jnp.tile(vec_c, N)                        # (R,), row = n*C + c
        if r_pad != R:
            rows = jnp.pad(rows, (0, r_pad - R))
        return jnp.broadcast_to(rows[:, None], (r_pad, 128)).astype(jnp.float32)

    scale_arr = _per_row_lane_dense(scale_c)
    bias_arr = _per_row_lane_dense(bias_c)

    y_p = pl.pallas_call(
        _bn_norm_kernel,
        out_shape=jax.ShapeDtypeStruct((r_pad, l_pad), x.dtype),
        grid=(n_r, n_l),
        in_specs=[
            pl.BlockSpec((r_blk, l_tile), lambda r, l: (r, l)),
            pl.BlockSpec((r_blk, 128), lambda r, l: (r, 0)),   # resident
            pl.BlockSpec((r_blk, 128), lambda r, l: (r, 0)),   # resident
        ],
        out_specs=pl.BlockSpec((r_blk, l_tile), lambda r, l: (r, l)),
        compiler_params=pltpu.CompilerParams(
            dimension_semantics=("parallel", "parallel"),
            vmem_limit_bytes=_VMEM_LIMIT_BYTES),
    )(x_p, scale_arr, bias_arr)

    y = y_p[:R, :L].reshape(N, C, H, W)
    return y, new_running_mean, new_running_var


if __name__ == "__main__":
    key = jax.random.PRNGKey(0)
    N, C, H, W = 2, 4, 16, 16
    x = jax.random.normal(key, (N, C, H, W), dtype=jnp.float32) * 2.0 + 0.5

    gamma = jnp.ones((C,), dtype=jnp.float32)
    beta = jnp.zeros((C,), dtype=jnp.float32)
    running_mean = jnp.zeros((C,), dtype=jnp.float32)
    running_var = jnp.ones((C,), dtype=jnp.float32)

    y, rm, rv = my_batchnorm2d(x, gamma, beta, running_mean, running_var,
                               eps=1e-5, momentum=0.1, training=True)
    jax.block_until_ready((y, rm, rv))

    # Plain-JAX reference of the PyTorch forward (training mode).
    mean = x.mean(axis=(0, 2, 3))
    var = x.var(axis=(0, 2, 3))  # biased (unbiased=False)
    x_hat = (x - mean[None, :, None, None]) / jnp.sqrt(var[None, :, None, None] + 1e-5)
    y_ref = gamma[None, :, None, None] * x_hat + beta[None, :, None, None]
    rm_ref = 0.9 * running_mean + 0.1 * mean
    rv_ref = 0.9 * running_var + 0.1 * var

    assert y.dtype == x.dtype
    assert jnp.allclose(y, y_ref, atol=1e-4, rtol=1e-4)
    assert jnp.allclose(rm, rm_ref, atol=1e-5, rtol=1e-5)
    assert jnp.allclose(rv, rv_ref, atol=1e-4, rtol=1e-4)

    # Eval-mode check (normalizes with running stats, no buffer update).
    y_eval, rm_e, rv_e = my_batchnorm2d(x, gamma, beta, rm, rv,
                                        eps=1e-5, momentum=0.1, training=False)
    jax.block_until_ready((y_eval, rm_e, rv_e))
    x_hat_e = (x - rm[None, :, None, None]) / jnp.sqrt(rv[None, :, None, None] + 1e-5)
    y_eval_ref = gamma[None, :, None, None] * x_hat_e + beta[None, :, None, None]
    assert jnp.allclose(y_eval, y_eval_ref, atol=1e-4, rtol=1e-4)
    assert jnp.allclose(rm_e, rm) and jnp.allclose(rv_e, rv)

    print("KERNEL_OK")
</pallas_src>

<mosaic_0001>
module attributes {stable_mosaic.version = 11 : i64} {
  func.func @_bn_stats_kernel(%arg0: i32, %arg1: i32, %arg2: memref<8x256xf32, #tpu.memory_space<vmem>>, %arg3: memref<8x128xf32, #tpu.memory_space<vmem>>, %arg4: memref<8x128xf32, #tpu.memory_space<vmem>>) attributes {dimension_semantics = [#tpu.dimension_semantics<parallel>, #tpu.dimension_semantics<arbitrary>], iteration_bounds = array<i64: 1, 1>, scalar_prefetch = 0 : i64, scratch_operands = 0 : i64, tpu.core_type = #tpu.core_type<tc>, window_params = [{transform_indices = @transform_0, window_bounds = array<i64: 8, 256>}, {transform_indices = @transform_1, window_bounds = array<i64: 8, 128>}, {transform_indices = @transform_2, window_bounds = array<i64: 8, 128>}]} {
    %c0_i32 = arith.constant 0 : i32
    %0 = arith.cmpi eq, %arg1, %c0_i32 : i32
    %1 = arith.extui %0 : i1 to i32
    %c0_i32_0 = arith.constant 0 : i32
    %2 = arith.cmpi ne, %1, %c0_i32_0 : i32
    scf.if %2 {
      %cst = arith.constant 0.000000e+00 : f32
      %15 = vector.broadcast %cst : f32 to vector<8x128xf32>
      %c0_11 = arith.constant 0 : index
      %c0_12 = arith.constant 0 : index
      %16 = vector.load %arg3[%c0_11, %c0_12] : memref<8x128xf32, #tpu.memory_space<vmem>>, vector<8x128xf32>
      tpu.vector_store %arg3[%c0_11, %c0_12], %15 {strides = array<i32>} : memref<8x128xf32, #tpu.memory_space<vmem>>, vector<8x128xf32>,
      %cst_13 = arith.constant 0.000000e+00 : f32
      %17 = vector.broadcast %cst_13 : f32 to vector<8x128xf32>
      %c0_14 = arith.constant 0 : index
      %c0_15 = arith.constant 0 : index
      %18 = vector.load %arg4[%c0_14, %c0_15] : memref<8x128xf32, #tpu.memory_space<vmem>>, vector<8x128xf32>
      tpu.vector_store %arg4[%c0_14, %c0_15], %17 {strides = array<i32>} : memref<8x128xf32, #tpu.memory_space<vmem>>, vector<8x128xf32>,
    } else {
    }
    %c0 = arith.constant 0 : index
    %c0_1 = arith.constant 0 : index
    %3 = vector.load %arg3[%c0, %c0_1] : memref<8x128xf32, #tpu.memory_space<vmem>>, vector<8x128xf32>
    %c0_2 = arith.constant 0 : index
    %c0_3 = arith.constant 0 : index
    %4 = vector.load %arg4[%c0_2, %c0_3] : memref<8x128xf32, #tpu.memory_space<vmem>>, vector<8x128xf32>
    %c0_4 = arith.constant 0 : index
    %c0_5 = arith.constant 0 : index
    %5 = vector.load %arg2[%c0_4, %c0_5] : memref<8x256xf32, #tpu.memory_space<vmem>>, vector<8x128xf32>
    %6 = arith.addf %3, %5 : vector<8x128xf32>
    %7 = arith.mulf %5, %5 : vector<8x128xf32>
    %8 = arith.addf %4, %7 : vector<8x128xf32>
    %c0_6 = arith.constant 0 : index
    %c128 = arith.constant 128 : index
    %9 = vector.load %arg2[%c0_6, %c128] : memref<8x256xf32, #tpu.memory_space<vmem>>, vector<8x128xf32>
    %10 = arith.addf %6, %9 : vector<8x128xf32>
    %11 = arith.mulf %9, %9 : vector<8x128xf32>
    %12 = arith.addf %8, %11 : vector<8x128xf32>
    %c0_7 = arith.constant 0 : index
    %c0_8 = arith.constant 0 : index
    %13 = vector.load %arg3[%c0_7, %c0_8] : memref<8x128xf32, #tpu.memory_space<vmem>>, vector<8x128xf32>
    tpu.vector_store %arg3[%c0_7, %c0_8], %10 {strides = array<i32>} : memref<8x128xf32, #tpu.memory_space<vmem>>, vector<8x128xf32>,
    %c0_9 = arith.constant 0 : index
    %c0_10 = arith.constant 0 : index
    %14 = vector.load %arg4[%c0_9, %c0_10] : memref<8x128xf32, #tpu.memory_space<vmem>>, vector<8x128xf32>
    tpu.vector_store %arg4[%c0_9, %c0_10], %12 {strides = array<i32>} : memref<8x128xf32, #tpu.memory_space<vmem>>, vector<8x128xf32>,
    return
  }
  func.func @transform_0(%arg0: i32, %arg1: i32) -> (i32, i32) {
    %c0_i32 = arith.constant 0 : i32
    return %arg0, %arg1 : i32, i32
  }
  func.func @transform_1(%arg0: i32, %arg1: i32) -> (i32, i32) {
    %c0_i32 = arith.constant 0 : i32
    %c0_i32_0 = arith.constant 0 : i32
    return %arg0, %c0_i32 : i32, i32
  }
  func.func @transform_2(%arg0: i32, %arg1: i32) -> (i32, i32) {
    %c0_i32 = arith.constant 0 : i32
    %c0_i32_0 = arith.constant 0 : i32
    return %arg0, %c0_i32 : i32, i32
  }
}

</mosaic_0001>

<llo_original>
// kernel: tpu_custom_call.1
$region0: #{tpu_custom_call.1}
  #allocation0 [shape = 'u32[]', space=smem, size = 0x4, offset = 0x4, fixed_abs, tag = 'smem constant byte address 0x4 - core index']
  #allocation1 [shape = 'u32[72,128]{1,0:T(1,128)}', space=vmem, size = 0x9000, scoped, tag = 'internal scratch']
  %s0 = inlined_call_operand.hbm [shape: f32[8,256], index: 0, kind: input, shape index: {}]
  %s1 = inlined_call_operand.hbm [shape: f32[8,128], index: 1, kind: output, shape index: {0}]
  %s2 = inlined_call_operand.hbm [shape: f32[8,128], index: 2, kind: output, shape index: {1}]
  %3 = xla_tuple %s1, %s2
  %s4 = sld [smem:[#allocation0]]
  $region30: #{tpu_custom_call.1} parent=0
    _
  %s6 = ssub.s32 1, %s4
  %s7 = scalar_select 0, %s6, %s4
  $region1: #{tpu_custom_call.1} parent=0
    #allocation2 [shape = 'u8[8192]{0}', space=vmem, size = 0x2000, scoped, tag = 'input window, operand 0, single buffered']
    #allocation3 [shape = 's32[1]{0}', space=sflag, size = 0x4, scoped, tag = 'scoped memory for tpu_custom_call.1']
    #allocation4 [shape = 's32[1]{0}', space=sflag, size = 0x4, scoped, tag = 'scoped memory for tpu_custom_call.1']
    #allocation5 [shape = 'u8[4096]{0}', space=vmem, size = 0x1000, scoped, tag = 'output window, operand 0, single buffered']
    #allocation6 [shape = 'u8[4096]{0}', space=vmem, size = 0x1000, scoped, tag = 'output window, operand 1, single buffered']
    #allocation7 [shape = 's32[1]{0}', space=sflag, size = 0x4, scoped, tag = 'scoped memory for tpu_custom_call.1']
    %8 = vsyncpa [#allocation3], 0
    %9 = vsyncpa [#allocation4], 0
    %10 = vsyncpa [#allocation7], 0
    // Predicated region
    $region2: #{tpu_custom_call.1} parent=1 // pred_check
      _
    $region3: #{tpu_custom_call.1} parent=1 // pred_check_branch
      %12 = sbr.rel (0) target = $region5
    $region4: #{tpu_custom_call.1} parent=1 // pred_region
      %14 = vsyncadd [#allocation3], 0
      %s16 = sshll.u32 %s0, 4
      %s17 = int_to_ptr.hbm [resolvable:$true] %s16
      %s18 = sshll.u32 [#allocation2], 4
      %s19 = int_to_ptr.vmem [resolvable:$true] %s18
      %21 = dma.hbm_to_vmem [thread:$0]  %s17, 256, %s19, [#allocation3]
    $region5: #{tpu_custom_call.1} parent=1 // pred_fallthru
      _
    // Predicated region
    $region6: #{tpu_custom_call.1} parent=1 // pred_check
      _
    $region7: #{tpu_custom_call.1} parent=1 // pred_check_branch
      %23 = sbr.rel (0) target = $region9
    $region8: #{tpu_custom_call.1} parent=1 // pred_region
      %25 = dma.done [#allocation3], 256
    $region9: #{tpu_custom_call.1} parent=1 // pred_fallthru
      _
    %p26 = scmp.eq.s32.totalorder 0, 0
    // Predicated region
    $region10: #{tpu_custom_call.1} parent=1 // pred_check
      %p27 = pneg %p26
    $region11: #{tpu_custom_call.1} parent=1 // pred_check_branch
      %29 = sbr.rel (%p27) target = $region13
    $region12: #{tpu_custom_call.1} parent=1 // pred_region
      %30 = vst [vmem:[#allocation5] sm:$0xff] 0.0
      %31 = vst [vmem:[#allocation6] sm:$0xff] 0.0
    $region13: #{tpu_custom_call.1} parent=1 // pred_fallthru
      _
    %v32 = vld [vmem:[#allocation5] sm:$0xff]
    %v33 = vld [vmem:[#allocation6] sm:$0xff]
    %v34 = vld [vmem:[#allocation2] sm:$0xff]
    %v35 = vadd.f32 %v32, %v34
    %v36 = vmul.f32 %v34, %v34
    %v37 = vadd.f32 %v33, %v36
    %v38 = vld [vmem:[#allocation2 + $0x8] sm:$0xff]
    %v39 = vadd.f32 %v35, %v38
    %v40 = vmul.f32 %v38, %v38
    %v41 = vadd.f32 %v37, %v40
    %42 = vst [vmem:[#allocation5] sm:$0xff] %v39
    %43 = vst [vmem:[#allocation6] sm:$0xff] %v41
    // Predicated region
    $region14: #{tpu_custom_call.1} parent=1 // pred_check
      _
    $region15: #{tpu_custom_call.1} parent=1 // pred_check_branch
      %45 = sbr.rel (0) target = $region17
    $region16: #{tpu_custom_call.1} parent=1 // pred_region
      %47 = vsyncadd [#allocation4], 0
      %s49 = sshll.u32 [#allocation5], 4
      %s50 = int_to_ptr.vmem [resolvable:$true] %s49
      %s51 = sshll.u32 %s1, 4
      %s52 = int_to_ptr.hbm [resolvable:$true] %s51
      %54 = dma.vmem_to_hbm [thread:$0]  %s50, 128, %s52, [#allocation4]
    $region17: #{tpu_custom_call.1} parent=1 // pred_fallthru
      _
    // Predicated region
    $region18: #{tpu_custom_call.1} parent=1 // pred_check
      _
    $region19: #{tpu_custom_call.1} parent=1 // pred_check_branch
      %56 = sbr.rel (0) target = $region21
    $region20: #{tpu_custom_call.1} parent=1 // pred_region
      %58 = vsyncadd [#allocation7], 0
      %s60 = sshll.u32 [#allocation6], 4
      %s61 = int_to_ptr.vmem [resolvable:$true] %s60
      %s62 = sshll.u32 %s2, 4
      %s63 = int_to_ptr.hbm [resolvable:$true] %s62
      %65 = dma.vmem_to_hbm [thread:$0]  %s61, 128, %s63, [#allocation7]
    $region21: #{tpu_custom_call.1} parent=1 // pred_fallthru
      _
    // Predicated region
    $region22: #{tpu_custom_call.1} parent=1 // pred_check
      _
    $region23: #{tpu_custom_call.1} parent=1 // pred_check_branch
      %67 = sbr.rel (0) target = $region25
    $region24: #{tpu_custom_call.1} parent=1 // pred_region
      %69 = dma.done [#allocation4], 128
    $region25: #{tpu_custom_call.1} parent=1 // pred_fallthru
      _
    // Predicated region
    $region26: #{tpu_custom_call.1} parent=1 // pred_check
      _
    $region27: #{tpu_custom_call.1} parent=1 // pred_check_branch
      %71 = sbr.rel (0) target = $region29
    $region28: #{tpu_custom_call.1} parent=1 // pred_region
      %73 = dma.done [#allocation7], 128
    $region29: #{tpu_custom_call.1} parent=1 // pred_fallthru
      _
    %74 = vsyncpa [#allocation3], 1
    %75 = vsyncpa [#allocation4], 1
    %76 = vsyncpa [#allocation7], 1

</llo_original>
